<compile_context>
chip_gen: v5e
topology: v5e:2x2
jax: 0.10.0
libtpu: 0.0.40
codegen_flags: <defaults>
</compile_context>

<pallas_src>
import jax
import jax.numpy as jnp
from jax.experimental import pallas as pl
from jax.experimental.pallas import tpu as pltpu


# ---------------------------------------------------------------------------
# Kernels
# ---------------------------------------------------------------------------

def _linclassifier_kernel(x_ref, w_ref, b_ref, o_ref):
    """Generic exact path: z = x @ W + b, then log-softmax over the last axis."""
    z = jnp.dot(x_ref[...], w_ref[...], preferred_element_type=jnp.float32)
    z = z + b_ref[...]                                   # (1, D_out) broadcasts over rows
    m = jnp.max(z, axis=-1, keepdims=True)
    shifted = z - m
    lse = jnp.log(jnp.sum(jnp.exp(shifted), axis=-1, keepdims=True))
    o_ref[...] = (shifted - lse).astype(o_ref.dtype)


def _linclassifier_kernel_packed(x_ref, wp_ref, bp_ref, ssum_ref, o_ref):
    """Lane-dense path: `pack` samples per 128-lane row.

    z[r, g*D_out + j] = logits of original row (pack*r + g), class j.
    The per-sample softmax denominator is obtained by multiplying exp(z - m)
    with a constant block matrix that sums (and broadcasts) within each group
    of D_out lanes.
    """
    z = jnp.dot(x_ref[...], wp_ref[...], preferred_element_type=jnp.float32)
    z = z + bp_ref[...]
    # Shared shift across the packed samples of one row (exact log-softmax for
    # any finite shift; avoids a cross-lane segmented max).
    m = jnp.max(z, axis=-1, keepdims=True)
    e = jnp.exp(z - m)
    denom = jnp.dot(e, ssum_ref[...], preferred_element_type=jnp.float32)
    o_ref[...] = (z - m - jnp.log(denom)).astype(o_ref.dtype)


# ---------------------------------------------------------------------------
# Tiling helpers
# ---------------------------------------------------------------------------

def _vmem_info():
    """Returns (physical VMEM bytes, budget for the streamed blocks)."""
    try:
        cap = int(pltpu.get_tpu_info().vmem_capacity_bytes)
    except Exception:
        cap = 64 * 1024 * 1024           # assume the smallest (v7x) if unknown
    # ~half of physical VMEM for the double-buffered streams; leave the rest
    # for resident params, internal scratch and headroom.
    budget = max(16 * 1024 * 1024, min(cap // 2, 80 * 1024 * 1024))
    return cap, budget


def _legalize_rows(tm, total_rows):
    """Row tile must be the full extent or a multiple of 8 (sublanes)."""
    tm = max(1, min(int(tm), total_rows))
    if tm == total_rows:
        return tm
    return min(max(8, (tm // 8) * 8), total_rows)


def _choose_rows(total_rows, stream_bytes_per_row, resident_bytes, budget):
    """Largest row tile whose double-buffered VMEM footprint fits the budget."""
    avail = max(budget - resident_bytes, 2 * 1024 * 1024)
    return _legalize_rows(avail // max(stream_bytes_per_row, 1), total_rows)


# ---------------------------------------------------------------------------
# Wrapper
# ---------------------------------------------------------------------------

def lin_classifier(x, w, b, *, block_rows=None, core_parallel=False):
    """LinClassifier forward: log_softmax(x @ w + b, axis=1) -> f32 log-probs.

    x: (B, D_in) float32 or bfloat16 (pass bf16 directly; x is never cast here).
    w: (D_in, D_out), b: (D_out,).
    block_rows: optional override of the batch rows processed per grid step.
    core_parallel: set True on multi-TensorCore chips (v7x) to shard the batch
      axis across cores via CORE_PARALLEL.
    """
    B, d_in = x.shape
    d_out = w.shape[1]
    cap, budget = _vmem_info()
    compute_dtype = x.dtype
    itemsize = x.dtype.itemsize

    sem = (pltpu.CORE_PARALLEL,) if core_parallel else ("arbitrary",)

    pack = (128 // d_out) if (0 < d_out <= 128 and 128 % d_out == 0) else 0
    wp_bytes = pack * d_in * 128 * itemsize if pack else 0
    use_packed = (
        pack >= 2
        and B % pack == 0
        and B >= pack
        and wp_bytes <= 8 * 1024 * 1024       # keep W' comfortably VMEM-resident
    )

    if use_packed:
        # ---------------- lane-dense packed path ----------------
        b_p = B // pack
        lanes = pack * d_out                  # == 128
        k = pack * d_in

        xp = x.reshape(b_p, k)                # layout-preserving reshape (free under jit)
        wp = jnp.kron(jnp.eye(pack, dtype=compute_dtype), w.astype(compute_dtype))
        bp = jnp.tile(b.astype(jnp.float32), pack).reshape(1, lanes)
        gid = jnp.arange(lanes) // d_out
        ssum = (gid[:, None] == gid[None, :]).astype(jnp.float32)

        # Per packed-row streamed VMEM bytes (lane-dense => padded == logical),
        # double-buffered by the Pallas pipeline.
        stream = 2 * (k * itemsize + lanes * 4)
        resident = 2 * (wp_bytes + lanes * lanes * 4 + lanes * 4)

        if block_rows is not None:
            tm_p = _legalize_rows(max(1, block_rows // pack), b_p)
        else:
            tm_p = _choose_rows(b_p, stream, resident, budget)

        needed = stream * tm_p + resident
        vmem_limit = int(max(32 << 20, min(needed + (8 << 20), cap - (8 << 20))))

        cost = pl.CostEstimate(
            flops=2 * b_p * k * lanes + 2 * b_p * lanes * lanes,
            transcendentals=B * d_out,
            bytes_accessed=(b_p * k * itemsize + wp_bytes
                            + lanes * lanes * 4 + lanes * 4
                            + b_p * lanes * 4),
        )

        out_packed = pl.pallas_call(
            _linclassifier_kernel_packed,
            out_shape=jax.ShapeDtypeStruct((b_p, lanes), jnp.float32),
            grid=(pl.cdiv(b_p, tm_p),),
            in_specs=[
                pl.BlockSpec((tm_p, k), lambda i: (i, 0)),        # x: lane-dense stream
                pl.BlockSpec((k, lanes), lambda i: (0, 0)),       # W': VMEM-resident
                pl.BlockSpec((1, lanes), lambda i: (0, 0)),       # b': VMEM-resident
                pl.BlockSpec((lanes, lanes), lambda i: (0, 0)),   # group-sum: resident
            ],
            out_specs=pl.BlockSpec((tm_p, lanes), lambda i: (i, 0)),
            compiler_params=pltpu.CompilerParams(
                dimension_semantics=sem,
                vmem_limit_bytes=vmem_limit,
            ),
            cost_estimate=cost,
        )(xp, wp, bp, ssum)
        return out_packed.reshape(B, d_out)   # free reshape back to (B, D_out)

    # ---------------- generic exact fallback path ----------------
    b2 = b.reshape(1, d_out).astype(jnp.float32)
    w_eff = w.astype(compute_dtype)

    lane_pad = lambda n: max(128, ((n + 127) // 128) * 128)
    sub_pad = lambda n: max(8, ((n + 7) // 8) * 8)
    # Padded (lane-rounded) VMEM footprint per batch row, double-buffered.
    stream = 2 * (lane_pad(d_in) * itemsize + lane_pad(d_out) * 4)
    resident = 2 * (sub_pad(d_in) * lane_pad(d_out) * itemsize + 8 * lane_pad(d_out) * 4)

    if block_rows is not None:
        tm = _legalize_rows(block_rows, B)
    else:
        tm = _choose_rows(B, stream, resident, budget)

    needed = stream * tm + resident
    vmem_limit = int(max(32 << 20, min(needed + (8 << 20), cap - (8 << 20))))

    cost = pl.CostEstimate(
        flops=2 * B * d_in * d_out,
        transcendentals=B * d_out,
        bytes_accessed=(B * d_in * itemsize + d_in * d_out * itemsize
                        + d_out * 4 + B * d_out * 4),
    )

    return pl.pallas_call(
        _linclassifier_kernel,
        out_shape=jax.ShapeDtypeStruct((B, d_out), jnp.float32),
        grid=(pl.cdiv(B, tm),),
        in_specs=[
            pl.BlockSpec((tm, d_in), lambda i: (i, 0)),      # x: tiled over batch
            pl.BlockSpec((d_in, d_out), lambda i: (0, 0)),   # W: VMEM-resident
            pl.BlockSpec((1, d_out), lambda i: (0, 0)),      # b: VMEM-resident
        ],
        out_specs=pl.BlockSpec((tm, d_out), lambda i: (i, 0)),
        compiler_params=pltpu.CompilerParams(
            dimension_semantics=sem,
            vmem_limit_bytes=vmem_limit,
        ),
        cost_estimate=cost,
    )(x, w_eff, b2)


# ---------------------------------------------------------------------------
# Self-test
# ---------------------------------------------------------------------------

if __name__ == "__main__":
    # Small shapes consistent with the module: batch=8, input_dim=32, output_dim=16.
    batch, input_dim, output_dim = 8, 32, 16

    key = jax.random.PRNGKey(0)
    kx, kw, kb = jax.random.split(key, 3)

    # Matches nn.Linear's default init range: uniform(-1/sqrt(in_dim), 1/sqrt(in_dim)).
    bound = 1.0 / (input_dim ** 0.5)
    w = jax.random.uniform(kw, (input_dim, output_dim), jnp.float32, -bound, bound)
    b = jax.random.uniform(kb, (output_dim,), jnp.float32, -bound, bound)
    x = jax.random.normal(kx, (batch, input_dim), jnp.float32)

    out = jax.block_until_ready(lin_classifier(x, w, b))
    ref = jax.nn.log_softmax(x @ w + b, axis=1)
    assert out.shape == (batch, output_dim)
    assert jnp.allclose(out, ref, atol=2e-5, rtol=2e-5)

    # Larger batch (multiple of pack=8), small forced tile to exercise a
    # multi-step lane-dense grid including a partial last tile.
    xb = jax.random.normal(jax.random.PRNGKey(1), (2056, input_dim), jnp.float32)
    out_b = jax.block_until_ready(lin_classifier(xb, w, b, block_rows=1024))
    ref_b = jax.nn.log_softmax(xb @ w + b, axis=1)
    assert out_b.shape == (2056, output_dim)
    assert jnp.allclose(out_b, ref_b, atol=2e-5, rtol=2e-5)

    # bf16 activations passed directly from the caller (no wrapper-side astype).
    out_bf = jax.block_until_ready(lin_classifier(xb.astype(jnp.bfloat16), w, b))
    assert out_bf.dtype == jnp.float32
    assert jnp.allclose(out_bf, ref_b, atol=5e-2, rtol=0)

    # Batch not a multiple of the packing factor -> generic exact fallback kernel.
    xc = jax.random.normal(jax.random.PRNGKey(2), (13, input_dim), jnp.float32)
    out_c = jax.block_until_ready(lin_classifier(xc, w, b))
    ref_c = jax.nn.log_softmax(xc @ w + b, axis=1)
    assert out_c.shape == (13, output_dim)
    assert jnp.allclose(out_c, ref_c, atol=2e-5, rtol=2e-5)

    print("KERNEL_OK")
</pallas_src>

<mosaic_0001>
module attributes {stable_mosaic.version = 11 : i64} {
  func.func @_linclassifier_kernel_packed(%arg0: i32, %arg1: memref<1x256xf32, #tpu.memory_space<vmem>>, %arg2: memref<256x128xf32, #tpu.memory_space<vmem>>, %arg3: memref<1x128xf32, #tpu.memory_space<vmem>>, %arg4: memref<128x128xf32, #tpu.memory_space<vmem>>, %arg5: memref<1x128xf32, #tpu.memory_space<vmem>>) attributes {dimension_semantics = [#tpu.dimension_semantics<arbitrary>], iteration_bounds = array<i64: 1>, scalar_prefetch = 0 : i64, scratch_operands = 0 : i64, tpu.core_type = #tpu.core_type<tc>, window_params = [{transform_indices = @transform_0, window_bounds = array<i64: 1, 256>}, {pipeline_mode = #tpu.pipeline_mode<synchronous>, transform_indices = @transform_1, window_bounds = array<i64: 256, 128>}, {pipeline_mode = #tpu.pipeline_mode<synchronous>, transform_indices = @transform_2, window_bounds = array<i64: 1, 128>}, {pipeline_mode = #tpu.pipeline_mode<synchronous>, transform_indices = @transform_3, window_bounds = array<i64: 128, 128>}, {transform_indices = @transform_4, window_bounds = array<i64: 1, 128>}]} {
    %c0 = arith.constant 0 : index
    %c0_0 = arith.constant 0 : index
    %0 = vector.load %arg1[%c0, %c0_0] : memref<1x256xf32, #tpu.memory_space<vmem>>, vector<1x256xf32>
    %c0_1 = arith.constant 0 : index
    %c0_2 = arith.constant 0 : index
    %1 = vector.load %arg2[%c0_1, %c0_2] : memref<256x128xf32, #tpu.memory_space<vmem>>, vector<256x128xf32>
    %cst = arith.constant dense<0.000000e+00> : vector<1x128xf32>
    %2 = tpu.matmul %0, %1, %cst {dimension_numbers = #tpu.dot_dimension_numbers<[1], [0], [0], [1], [0, 0, 1, 1], [], []>} : vector<1x256xf32>, vector<256x128xf32>, vector<1x128xf32> -> vector<1x128xf32>
    %c0_3 = arith.constant 0 : index
    %c0_4 = arith.constant 0 : index
    %3 = vector.load %arg3[%c0_3, %c0_4] : memref<1x128xf32, #tpu.memory_space<vmem>>, vector<1x128xf32>
    %4 = arith.addf %2, %3 : vector<1x128xf32>
    %cst_5 = arith.constant dense<0xFF800000> : vector<1xf32>
    %5 = vector.multi_reduction <maximumf>, %4, %cst_5 [1] : vector<1x128xf32> to vector<1xf32>
    %6 = vector.shape_cast %5 : vector<1xf32> to vector<1x1xf32>
    %7 = vector.broadcast %6 : vector<1x1xf32> to vector<1x128xf32>
    %8 = arith.subf %4, %7 : vector<1x128xf32>
    %9 = math.exp %8 : vector<1x128xf32>
    %c0_6 = arith.constant 0 : index
    %c0_7 = arith.constant 0 : index
    %10 = vector.load %arg4[%c0_6, %c0_7] : memref<128x128xf32, #tpu.memory_space<vmem>>, vector<128x128xf32>
    %cst_8 = arith.constant dense<0.000000e+00> : vector<1x128xf32>
    %11 = tpu.matmul %9, %10, %cst_8 {dimension_numbers = #tpu.dot_dimension_numbers<[1], [0], [0], [1], [0, 0, 1, 1], [], []>} : vector<1x128xf32>, vector<128x128xf32>, vector<1x128xf32> -> vector<1x128xf32>
    %12 = vector.broadcast %6 : vector<1x1xf32> to vector<1x128xf32>
    %13 = arith.subf %4, %12 : vector<1x128xf32>
    %14 = math.log %11 : vector<1x128xf32>
    %15 = arith.subf %13, %14 : vector<1x128xf32>
    %c0_9 = arith.constant 0 : index
    %c0_10 = arith.constant 0 : index
    %16 = vector.load %arg5[%c0_9, %c0_10] : memref<1x128xf32, #tpu.memory_space<vmem>>, vector<1x128xf32>
    tpu.vector_store %arg5[%c0_9, %c0_10], %15 {strides = array<i32>} : memref<1x128xf32, #tpu.memory_space<vmem>>, vector<1x128xf32>,
    return
  }
  func.func @transform_0(%arg0: i32) -> (i32, i32) {
    %c0_i32 = arith.constant 0 : i32
    %c0_i32_0 = arith.constant 0 : i32
    return %arg0, %c0_i32 : i32, i32
  }
  func.func @transform_1(%arg0: i32) -> (i32, i32) {
    %c0_i32 = arith.constant 0 : i32
    %c0_i32_0 = arith.constant 0 : i32
    %c0_i32_1 = arith.constant 0 : i32
    return %c0_i32, %c0_i32_0 : i32, i32
  }
  func.func @transform_2(%arg0: i32) -> (i32, i32) {
    %c0_i32 = arith.constant 0 : i32
    %c0_i32_0 = arith.constant 0 : i32
    %c0_i32_1 = arith.constant 0 : i32
    return %c0_i32, %c0_i32_0 : i32, i32
  }
  func.func @transform_3(%arg0: i32) -> (i32, i32) {
    %c0_i32 = arith.constant 0 : i32
    %c0_i32_0 = arith.constant 0 : i32
    %c0_i32_1 = arith.constant 0 : i32
    return %c0_i32, %c0_i32_0 : i32, i32
  }
  func.func @transform_4(%arg0: i32) -> (i32, i32) {
    %c0_i32 = arith.constant 0 : i32
    %c0_i32_0 = arith.constant 0 : i32
    return %arg0, %c0_i32 : i32, i32
  }
}

</mosaic_0001>

<llo_original>
// kernel: tpu_custom_call.1
$region0: #{tpu_custom_call.1}
  #allocation0 [shape = 'u32[]', space=smem, size = 0x4, offset = 0x4, fixed_abs, tag = 'smem constant byte address 0x4 - core index']
  #allocation1 [shape = 'u32[72,128]{1,0:T(1,128)}', space=vmem, size = 0x9000, scoped, tag = 'internal scratch']
  %s0 = inlined_call_operand.hbm [shape: f32[1,256], index: 0, kind: input, shape index: {}]
  %s1 = inlined_call_operand.hbm [shape: f32[256,128], index: 1, kind: input, shape index: {}]
  %s2 = inlined_call_operand.vmem [shape: f32[1,128], index: 2, kind: input, shape index: {}]
  %s3 = inlined_call_operand.hbm [shape: f32[128,128], index: 3, kind: input, shape index: {}]
  %s4 = inlined_call_operand.hbm [shape: f32[1,128], index: 4, kind: output, shape index: {}]
  %s5 = sld [smem:[#allocation0]]
  $region38: #{tpu_custom_call.1} parent=0
    _
  %s7 = ssub.s32 1, %s5
  %s8 = scalar_select 0, %s7, %s5
  $region1: #{tpu_custom_call.1} parent=0
    #allocation2 [shape = 'u8[1024]{0}', space=vmem, size = 0x400, scoped, tag = 'input window, operand 0, single buffered']
    #allocation3 [shape = 's32[1]{0}', space=sflag, size = 0x4, scoped, tag = 'scoped memory for tpu_custom_call.1']
    #allocation4 [shape = 's32[1]{0}', space=sflag, size = 0x4, scoped, tag = 'scoped memory for tpu_custom_call.1']
    #allocation5 [shape = 'u8[131072]{0}', space=vmem, size = 0x20000, scoped, tag = 'input window, operand 1, single buffered']
    #allocation6 [shape = 's32[1]{0}', space=sflag, size = 0x4, scoped, tag = 'scoped memory for tpu_custom_call.1']
    #allocation7 [shape = 'u8[65536]{0}', space=vmem, size = 0x10000, scoped, tag = 'input window, operand 3, single buffered']
    #allocation8 [shape = 'u8[512]{0}', space=vmem, size = 0x400, scoped, tag = 'output window, operand 0, single buffered']
    %9 = vsyncpa [#allocation3], 0
    %10 = vsyncpa [#allocation6], 0
    %11 = vsyncpa [#allocation4], 0
    // Predicated region
    $region2: #{tpu_custom_call.1} parent=1 // pred_check
      _
    $region3: #{tpu_custom_call.1} parent=1 // pred_check_branch
      %13 = sbr.rel (0) target = $region5
    $region4: #{tpu_custom_call.1} parent=1 // pred_region
      %15 = vsyncadd [#allocation3], 0
      %s17 = sshll.u32 %s0, 4
      %s18 = int_to_ptr.hbm [resolvable:$true] %s17
      %s19 = sshll.u32 [#allocation2], 4
      %s20 = int_to_ptr.vmem [resolvable:$true] %s19
      %22 = dma.hbm_to_vmem [thread:$0]  %s18, 32, %s20, [#allocation3]
    $region5: #{tpu_custom_call.1} parent=1 // pred_fallthru
      _
    // Predicated region
    $region6: #{tpu_custom_call.1} parent=1 // pred_check
      _
    $region7: #{tpu_custom_call.1} parent=1 // pred_check_branch
      %24 = sbr.rel (0) target = $region9
    $region8: #{tpu_custom_call.1} parent=1 // pred_region
      %26 = vsyncadd [#allocation6], 0
      %s27 = sshll.u32 %s1, 4
      %s28 = int_to_ptr.hbm [resolvable:$true] %s27
      %s29 = sshll.u32 [#allocation5], 4
      %s30 = int_to_ptr.vmem [resolvable:$true] %s29
      %35 = dma.hbm_to_vmem [thread:$0]  %s28, 4096, %s30, [#allocation6], 128, 128, 8
    $region9: #{tpu_custom_call.1} parent=1 // pred_fallthru
      _
    // Predicated region
    $region10: #{tpu_custom_call.1} parent=1 // pred_check
      _
    $region11: #{tpu_custom_call.1} parent=1 // pred_check_branch
      %37 = sbr.rel (0) target = $region13
    $region12: #{tpu_custom_call.1} parent=1 // pred_region
      _
    $region13: #{tpu_custom_call.1} parent=1 // pred_fallthru
      _
    // Predicated region
    $region14: #{tpu_custom_call.1} parent=1 // pred_check
      _
    $region15: #{tpu_custom_call.1} parent=1 // pred_check_branch
      %39 = sbr.rel (0) target = $region17
    $region16: #{tpu_custom_call.1} parent=1 // pred_region
      %41 = vsyncadd [#allocation6], 0
      %s42 = sshll.u32 %s3, 4
      %s43 = int_to_ptr.hbm [resolvable:$true] %s42
      %s44 = sshll.u32 [#allocation7], 4
      %s45 = int_to_ptr.vmem [resolvable:$true] %s44
      %50 = dma.hbm_to_vmem [thread:$0]  %s43, 2048, %s45, [#allocation6], 128, 128, 8
    $region17: #{tpu_custom_call.1} parent=1 // pred_fallthru
      _
    // Predicated region
    $region18: #{tpu_custom_call.1} parent=1 // pred_check
      _
    $region19: #{tpu_custom_call.1} parent=1 // pred_check_branch
      %52 = sbr.rel (0) target = $region21
    $region20: #{tpu_custom_call.1} parent=1 // pred_region
      %54 = dma.done [#allocation3], 32
    $region21: #{tpu_custom_call.1} parent=1 // pred_fallthru
      _
    // Predicated region
    $region22: #{tpu_custom_call.1} parent=1 // pred_check
      _
    $region23: #{tpu_custom_call.1} parent=1 // pred_check_branch
      %56 = sbr.rel (0) target = $region25
    $region24: #{tpu_custom_call.1} parent=1 // pred_region
      %58 = dma.done [#allocation6], 4096
    $region25: #{tpu_custom_call.1} parent=1 // pred_fallthru
      _
    // Predicated region
    $region26: #{tpu_custom_call.1} parent=1 // pred_check
      _
    $region27: #{tpu_custom_call.1} parent=1 // pred_check_branch
      %60 = sbr.rel (0) target = $region29
    $region28: #{tpu_custom_call.1} parent=1 // pred_region
      %62 = dma.done [#allocation6], 2048
    $region29: #{tpu_custom_call.1} parent=1 // pred_fallthru
      _
    %v63 = vld [vmem:[#allocation2] sm:$0x3]
    %v64 = vld [vmem:[#allocation5] sm:$0xff]
    %v65 = vld [vmem:[#allocation5 + $0x8] sm:$0xff]
    %v66 = vld [vmem:[#allocation5 + $0x10] sm:$0xff]
    %v67 = vld [vmem:[#allocation5 + $0x18] sm:$0xff]
    %v68 = vld [vmem:[#allocation5 + $0x20] sm:$0xff]
    %v69 = vld [vmem:[#allocation5 + $0x28] sm:$0xff]
    %v70 = vld [vmem:[#allocation5 + $0x30] sm:$0xff]
    %v71 = vld [vmem:[#allocation5 + $0x38] sm:$0xff]
    %v72 = vld [vmem:[#allocation5 + $0x40] sm:$0xff]
    %v73 = vld [vmem:[#allocation5 + $0x48] sm:$0xff]
    %v74 = vld [vmem:[#allocation5 + $0x50] sm:$0xff]
    %v75 = vld [vmem:[#allocation5 + $0x58] sm:$0xff]
    %v76 = vld [vmem:[#allocation5 + $0x60] sm:$0xff]
    %v77 = vld [vmem:[#allocation5 + $0x68] sm:$0xff]
    %v78 = vld [vmem:[#allocation5 + $0x70] sm:$0xff]
    %v79 = vld [vmem:[#allocation5 + $0x78] sm:$0xff]
    %v80 = vld [vmem:[#allocation5 + $0x80] sm:$0xff]
    %v81 = vld [vmem:[#allocation5 + $0x88] sm:$0xff]
    %v82 = vld [vmem:[#allocation5 + $0x90] sm:$0xff]
    %v83 = vld [vmem:[#allocation5 + $0x98] sm:$0xff]
    %v84 = vld [vmem:[#allocation5 + $0xa0] sm:$0xff]
    %v85 = vld [vmem:[#allocation5 + $0xa8] sm:$0xff]
    %v86 = vld [vmem:[#allocation5 + $0xb0] sm:$0xff]
    %v87 = vld [vmem:[#allocation5 + $0xb8] sm:$0xff]
    %v88 = vld [vmem:[#allocation5 + $0xc0] sm:$0xff]
    %v89 = vld [vmem:[#allocation5 + $0xc8] sm:$0xff]
    %v90 = vld [vmem:[#allocation5 + $0xd0] sm:$0xff]
    %v91 = vld [vmem:[#allocation5 + $0xd8] sm:$0xff]
    %v92 = vld [vmem:[#allocation5 + $0xe0] sm:$0xff]
    %v93 = vld [vmem:[#allocation5 + $0xe8] sm:$0xff]
    %v94 = vld [vmem:[#allocation5 + $0xf0] sm:$0xff]
    %v95 = vld [vmem:[#allocation5 + $0xf8] sm:$0xff]
    %v96 = vld [vmem:[%s2] sm:$0x1]
    %v98 = vperm.slane %v63, 0
    %v99 = vperm.slane %v63, 1
    %102 = vmatpush.msra.mxu0 %v79
    %103 = vmatpush.msra.mxu0 %v78
    %104 = vmatpush.msra.mxu0 %v77
    %105 = vmatpush.msra.mxu0 %v76
    %106 = vmatpush.msra.mxu0 %v75
    %107 = vmatpush.msra.mxu0 %v74
    %108 = vmatpush.msra.mxu0 %v73
    %109 = vmatpush.msra.mxu0 %v72
    %110 = vmatpush.msra.mxu0 %v71
    %111 = vmatpush.msra.mxu0 %v70
    %112 = vmatpush.msra.mxu0 %v69
    %113 = vmatpush.msra.mxu0 %v68
    %114 = vmatpush.msra.mxu0 %v67
    %115 = vmatpush.msra.mxu0 %v66
    %116 = vmatpush.msra.mxu0 %v65
    %117 = vmatpush.msra.mxu0 %v64
    %118 = vmatmul.f32.gmra.mxu0 %v98
    %v119 = vpop.f32.mrf.mxu0
    %v120 = vadd.f32 %v96, %v119
    %121 = vdwg.mxu0
    %122 = vmatpush.msra.mxu0 %v95
    %123 = vmatpush.msra.mxu0 %v94
    %124 = vmatpush.msra.mxu0 %v93
    %125 = vmatpush.msra.mxu0 %v92
    %126 = vmatpush.msra.mxu0 %v91
    %127 = vmatpush.msra.mxu0 %v90
    %128 = vmatpush.msra.mxu0 %v89
    %129 = vmatpush.msra.mxu0 %v88
    %130 = vmatpush.msra.mxu0 %v87
    %131 = vmatpush.msra.mxu0 %v86
    %132 = vmatpush.msra.mxu0 %v85
    %133 = vmatpush.msra.mxu0 %v84
    %134 = vmatpush.msra.mxu0 %v83
    %135 = vmatpush.msra.mxu0 %v82
    %136 = vmatpush.msra.mxu0 %v81
    %137 = vmatpush.msra.mxu0 %v80
    %138 = vmatmul.f32.gmra.mxu0 %v99
    %v139 = vpop.f32.mrf.mxu0
    %v140 = vadd.f32 %v120, %v139
    %141 = vdwg.mxu0
    %vm142 = vcmask 1040384
    %v143 = vsel %vm142, %v140, -inf
    %144 = vmax.xlane.f32.xlu0 %v143
    %v145 = vpop.xlane.xlu0 %144
    %v146 = vsub.f32 %v140, %v145
    %v147 = vmul.f32 %v146, 1.442695
    %v148 = vpow.pop %v147
    %v149 = vld [vmem:[#allocation7] sm:$0xff]
    %v150 = vld [vmem:[#allocation7 + $0x8] sm:$0xff]
    %v151 = vld [vmem:[#allocation7 + $0x10] sm:$0xff]
    %v152 = vld [vmem:[#allocation7 + $0x18] sm:$0xff]
    %v153 = vld [vmem:[#allocation7 + $0x20] sm:$0xff]
    %v154 = vld [vmem:[#allocation7 + $0x28] sm:$0xff]
    %v155 = vld [vmem:[#allocation7 + $0x30] sm:$0xff]
    %v156 = vld [vmem:[#allocation7 + $0x38] sm:$0xff]
    %v157 = vld [vmem:[#allocation7 + $0x40] sm:$0xff]
    %v158 = vld [vmem:[#allocation7 + $0x48] sm:$0xff]
    %v159 = vld [vmem:[#allocation7 + $0x50] sm:$0xff]
    %v160 = vld [vmem:[#allocation7 + $0x58] sm:$0xff]
    %v161 = vld [vmem:[#allocation7 + $0x60] sm:$0xff]
    %v162 = vld [vmem:[#allocation7 + $0x68] sm:$0xff]
    %v163 = vld [vmem:[#allocation7 + $0x70] sm:$0xff]
    %v164 = vld [vmem:[#allocation7 + $0x78] sm:$0xff]
    %165 = vmatpush.msra.mxu0 %v164
    %166 = vmatpush.msra.mxu0 %v163
    %167 = vmatpush.msra.mxu0 %v162
    %168 = vmatpush.msra.mxu0 %v161
    %169 = vmatpush.msra.mxu0 %v160
    %170 = vmatpush.msra.mxu0 %v159
    %171 = vmatpush.msra.mxu0 %v158
    %172 = vmatpush.msra.mxu0 %v157
    %173 = vmatpush.msra.mxu0 %v156
    %174 = vmatpush.msra.mxu0 %v155
    %175 = vmatpush.msra.mxu0 %v154
    %176 = vmatpush.msra.mxu0 %v153
    %177 = vmatpush.msra.mxu0 %v152
    %178 = vmatpush.msra.mxu0 %v151
    %179 = vmatpush.msra.mxu0 %v150
    %180 = vmatpush.msra.mxu0 %v149
    %181 = vmatmul.f32.gmra.mxu0 %v148
    %v182 = vpop.f32.mrf.mxu0
    %v183 = vadd.f32 0.0, %v182
    %184 = vdwg.mxu0
    %v185 = vlog2.pop %v183
    %v186 = vmul.f32 %v185, 0.6931472
    %v187 = vsub.f32 %v146, %v186
    %188 = vst [vmem:[#allocation8] sm:$0x1] %v187
    // Predicated region
    $region30: #{tpu_custom_call.1} parent=1 // pred_check
      _
    $region31: #{tpu_custom_call.1} parent=1 // pred_check_branch
      %190 = sbr.rel (0) target = $region33
    $region32: #{tpu_custom_call.1} parent=1 // pred_region
      %192 = vsyncadd [#allocation4], 0
      %s194 = sshll.u32 [#allocation8], 4
      %s195 = int_to_ptr.vmem [resolvable:$true] %s194
      %s196 = sshll.u32 %s4, 4
      %s197 = int_to_ptr.hbm [resolvable:$true] %s196
      %199 = dma.vmem_to_hbm [thread:$0]  %s195, 16, %s197, [#allocation4]
    $region33: #{tpu_custom_call.1} parent=1 // pred_fallthru
      _
    // Predicated region
    $region34: #{tpu_custom_call.1} parent=1 // pred_check
      _
    $region35: #{tpu_custom_call.1} parent=1 // pred_check_branch
      %201 = sbr.rel (0) target = $region37
    $region36: #{tpu_custom_call.1} parent=1 // pred_region
      %203 = dma.done [#allocation4], 16
    $region37: #{tpu_custom_call.1} parent=1 // pred_fallthru
      _
    %204 = vsyncpa [#allocation3], 1
    %205 = vsyncpa [#allocation6], 1
    %206 = vsyncpa [#allocation4], 1

</llo_original>
